<compile_context>
chip_gen: v6e
topology: v6e:2x2x1
jax: 0.10.0
libtpu: 0.0.40
codegen_flags: <defaults>
</compile_context>

<pallas_src>
import jax
import jax.numpy as jnp
from jax import lax
from jax.experimental import pallas as pl
from jax.experimental.pallas import tpu as pltpu

_CHUNK_S = 512  # rows of S reduced per inner-loop step (multiple of 8)


def _make_si_kernel(S, chunk):
    """Build the kernel for a fixed (static) S and S-chunk size."""
    n_full = S // chunk
    rem = S - n_full * chunk
    inv_s = 1.0 / S
    inv_sm1 = (1.0 / (S - 1)) if S > 1 else float("nan")

    def kernel(prob_ref, out_ref):
        tb = prob_ref.shape[0]
        nt = prob_ref.shape[2]

        def chunk_sums(start, size):
            x = prob_ref[:, pl.ds(start, size), :].astype(jnp.float32)
            return jnp.sum(x, axis=1), jnp.sum(x * x, axis=1)

        if n_full <= 1 and rem == 0:
            # Whole S fits one chunk (common small-S case): no loop carry at all.
            s1, s2 = chunk_sums(0, S)
        else:
            zeros = jnp.zeros((tb, nt), jnp.float32)

            def body(c, carry):
                a1, a2 = carry
                start = pl.multiple_of(c * chunk, chunk)
                d1, d2 = chunk_sums(start, chunk)
                return a1 + d1, a2 + d2

            s1, s2 = lax.fori_loop(0, n_full, body, (zeros, zeros))
            if rem:
                d1, d2 = chunk_sums(n_full * chunk, rem)
                s1 = s1 + d1
                s2 = s2 + d2

        # Unbiased variance (torch.std correction=1), single-pass form.
        # prob values are probabilities (O(1)), so cancellation is benign; clamp
        # tiny negative residue.  jnp.maximum propagates the S==1 NaN (torch parity).
        var = jnp.maximum((s2 - s1 * s1 * inv_s) * inv_sm1, 0.0)
        std = jnp.sqrt(var)                                  # EUP slot (free-ish)
        # Lane-dense, unmasked store of per-lane partial sums over the TB batch rows.
        out_ref[0] = jnp.sum(std, axis=0, keepdims=True)     # (1, NT)

    return kernel


def _pick_tiles(B, S, N, itemsize, target_bytes=8 << 20, vmem_budget=40 << 20):
    """Pick (TB, NT, chunk) with TB | B, NT | N, NT a multiple of 128.

    Dtype-aware: tile bytes use the input itemsize, and the VMEM check counts the
    double-buffered input plus the f32 chunk temporaries (x upcast and x*x)."""
    chunk = min(S, _CHUNK_S)

    def vmem_need(tb, nt):
        tile_in = tb * S * nt * itemsize        # one input buffer
        chunk_f32 = tb * chunk * nt * 4         # f32 upcast of one S-chunk
        return 2 * tile_in + 2 * chunk_f32      # dbl-buffered input + x, x*x temps

    nt = 128
    while (nt * 2 <= N and N % (nt * 2) == 0
           and S * (nt * 2) * itemsize <= target_bytes
           and vmem_need(1, nt * 2) <= vmem_budget):
        nt *= 2
    tb = 1
    while (tb * 2 <= B and B % (tb * 2) == 0
           and (tb * 2) * S * nt * itemsize <= target_bytes
           and vmem_need(tb * 2, nt) <= vmem_budget):
        tb *= 2

    # v7x megacore: keep >= 2 grid steps when possible so both TensorCores get work.
    if (B // tb) * (N // nt) < 2:
        if tb > 1:
            tb //= 2
        elif nt >= 256:
            nt //= 2

    return tb, nt, chunk


def source_inconsistency_loss(prob):
    """prob: f32/bf16 [B, S, N] -> scalar f32 = mean_{b,n} std_{s}(prob[b, s, n]).

    Matches torch source_inconsistency_loss.forward (unbiased std over dim=1,
    then mean over dim=1, then mean over dim=0). S == 1 yields NaN, like torch.
    """
    B, S, N = prob.shape
    itemsize = jnp.dtype(prob.dtype).itemsize

    # Pad N up to a multiple of 128: lane-dense unmasked stores, and the N axis
    # stays tileable (padded lanes are sliced out of the partials below).
    n_pad = (-N) % 128
    N_p = N + n_pad
    if n_pad:
        prob = jnp.pad(prob, ((0, 0), (0, 0), (0, n_pad)))

    tb, nt, chunk = _pick_tiles(B, S, N_p, itemsize)
    n_bt = B // tb
    n_nt = N_p // nt

    # Scoped-VMEM limit: enough for double-buffered tiles + f32 chunk temporaries,
    # capped at 48 MiB so it is safe on v7x's 64 MiB physical VMEM.
    tile_in = tb * S * nt * itemsize
    chunk_f32 = tb * chunk * nt * 4
    vmem_need = 2 * tile_in + 2 * chunk_f32 + 4 * nt * 4
    vmem_limit = int(min(48 << 20, max(32 << 20, (vmem_need * 5) // 4)))

    cost = pl.CostEstimate(
        flops=3 * B * S * N_p,                   # Σx, x*x, Σx² (plus O(B*N) epilogue)
        transcendentals=B * N_p,                 # sqrt per (b, n)
        bytes_accessed=B * S * N_p * itemsize + n_bt * N_p * 4,
    )

    partials = pl.pallas_call(
        _make_si_kernel(S, chunk),
        out_shape=jax.ShapeDtypeStruct((n_bt, 1, N_p), jnp.float32),
        grid_spec=pltpu.PrefetchScalarGridSpec(
            num_scalar_prefetch=0,
            grid=(n_bt, n_nt),
            in_specs=[pl.BlockSpec((tb, S, nt), lambda i, j: (i, 0, j))],
            out_specs=pl.BlockSpec((1, 1, nt), lambda i, j: (i, 0, j)),
        ),
        compiler_params=pltpu.CompilerParams(
            dimension_semantics=("parallel", "parallel"),
            vmem_limit_bytes=vmem_limit),
        cost_estimate=cost,
    )(prob)

    if n_pad:
        partials = partials[:, :, :N]
    # Tiny final reduction in JAX: sum of all B*N per-(b,n) std values / (B*N).
    return jnp.sum(partials) / (B * N)


if __name__ == "__main__":
    key = jax.random.PRNGKey(0)

    # Main check: small, lane-aligned shape.
    B, S, N = 2, 8, 128
    prob = jax.random.uniform(key, (B, S, N), dtype=jnp.float32)
    loss = source_inconsistency_loss(prob)
    jax.block_until_ready(loss)
    ref = jnp.mean(jnp.std(prob, axis=1, ddof=1))
    assert jnp.allclose(loss, ref, rtol=2e-5, atol=1e-6), (loss, ref)

    # Second check: N not a multiple of 128 (exercises the padding path) and odd S.
    B2, S2, N2 = 2, 7, 160
    prob2 = jax.random.uniform(jax.random.PRNGKey(1), (B2, S2, N2), dtype=jnp.float32)
    loss2 = source_inconsistency_loss(prob2)
    jax.block_until_ready(loss2)
    ref2 = jnp.mean(jnp.std(prob2, axis=1, ddof=1))
    assert jnp.allclose(loss2, ref2, rtol=2e-5, atol=1e-6), (loss2, ref2)

    print("KERNEL_OK")
</pallas_src>

<mosaic_0001>
module attributes {stable_mosaic.version = 11 : i64} {
  func.func @kernel(%arg0: i32, %arg1: i32, %arg2: memref<1x8x128xf32, #tpu.memory_space<vmem>>, %arg3: memref<1x1x128xf32, #tpu.memory_space<vmem>>) attributes {dimension_semantics = [#tpu.dimension_semantics<parallel>, #tpu.dimension_semantics<parallel>], iteration_bounds = array<i64: 2, 1>, scalar_prefetch = 0 : i64, scratch_operands = 0 : i64, tpu.core_type = #tpu.core_type<tc>, window_params = [{transform_indices = @transform_0, window_bounds = array<i64: 1, 8, 128>}, {transform_indices = @transform_1, window_bounds = array<i64: 1, 1, 128>}]} {
    %c0 = arith.constant 0 : index
    %c0_0 = arith.constant 0 : index
    %c0_1 = arith.constant 0 : index
    %0 = vector.load %arg2[%c0, %c0_0, %c0_1] : memref<1x8x128xf32, #tpu.memory_space<vmem>>, vector<1x8x128xf32>
    %cst = arith.constant dense<0.000000e+00> : vector<1x128xf32>
    %1 = vector.multi_reduction <add>, %0, %cst [1] : vector<1x8x128xf32> to vector<1x128xf32>
    %2 = arith.mulf %0, %0 : vector<1x8x128xf32>
    %cst_2 = arith.constant dense<0.000000e+00> : vector<1x128xf32>
    %3 = vector.multi_reduction <add>, %2, %cst_2 [1] : vector<1x8x128xf32> to vector<1x128xf32>
    %4 = arith.mulf %1, %1 : vector<1x128xf32>
    %cst_3 = arith.constant 1.250000e-01 : f32
    %5 = vector.broadcast %cst_3 : f32 to vector<1x128xf32>
    %6 = arith.mulf %4, %5 : vector<1x128xf32>
    %7 = arith.subf %3, %6 : vector<1x128xf32>
    %cst_4 = arith.constant 0.142857149 : f32
    %8 = vector.broadcast %cst_4 : f32 to vector<1x128xf32>
    %9 = arith.mulf %7, %8 : vector<1x128xf32>
    %cst_5 = arith.constant 0.000000e+00 : f32
    %10 = vector.broadcast %cst_5 : f32 to vector<1x128xf32>
    %11 = arith.maximumf %9, %10 : vector<1x128xf32>
    %12 = math.sqrt %11 : vector<1x128xf32>
    %cst_6 = arith.constant dense<0.000000e+00> : vector<128xf32>
    %13 = vector.multi_reduction <add>, %12, %cst_6 [0] : vector<1x128xf32> to vector<128xf32>
    %14 = vector.shape_cast %13 : vector<128xf32> to vector<1x128xf32>
    %c0_7 = arith.constant 0 : index
    %c0_8 = arith.constant 0 : index
    %c0_9 = arith.constant 0 : index
    %15 = vector.load %arg3[%c0_7, %c0_8, %c0_9] : memref<1x1x128xf32, #tpu.memory_space<vmem>>, vector<1x1x128xf32>
    %16 = vector.shape_cast %15 : vector<1x1x128xf32> to vector<1x128xf32>
    %17 = vector.shape_cast %14 : vector<1x128xf32> to vector<1x1x128xf32>
    tpu.vector_store %arg3[%c0_7, %c0_8, %c0_9], %17 {strides = array<i32>} : memref<1x1x128xf32, #tpu.memory_space<vmem>>, vector<1x1x128xf32>,
    return
  }
  func.func @transform_0(%arg0: i32, %arg1: i32) -> (i32, i32, i32) {
    %c0_i32 = arith.constant 0 : i32
    %c0_i32_0 = arith.constant 0 : i32
    return %arg0, %c0_i32, %arg1 : i32, i32, i32
  }
  func.func @transform_1(%arg0: i32, %arg1: i32) -> (i32, i32, i32) {
    %c0_i32 = arith.constant 0 : i32
    %c0_i32_0 = arith.constant 0 : i32
    return %arg0, %c0_i32, %arg1 : i32, i32, i32
  }
}

</mosaic_0001>

<llo_original>
// kernel: tpu_custom_call.1
$region0: #{tpu_custom_call.1}
  #allocation0 [shape = 'u32[]', space=smem, size = 0x4, offset = 0x4, fixed_abs, tag = 'smem constant byte address 0x4 - core index']
  #allocation1 [shape = 'u32[144,128]{1,0:T(1,128)}', space=vmem, size = 0x12000, scoped, tag = 'internal scratch']
  %s0 = inlined_call_operand.hbm [shape: f32[2,8,128], index: 0, kind: input, shape index: {}]
  %s1 = inlined_call_operand.hbm [shape: f32[2,1,128], index: 1, kind: output, shape index: {}]
  %s2 = sld [smem:[#allocation0]]
  $region41: #{tpu_custom_call.1} parent=0
    _
  %s4 = ssub.s32 1, %s2
  %s5 = scalar_select 0, %s4, %s2
  $region1: #{tpu_custom_call.1} parent=0
    #allocation2 [shape = 'u8[8192]{0}', space=vmem, size = 0x2000, scoped, tag = 'input window, operand 0']
    #allocation3 [shape = 's32[2]{0}', space=sflag, size = 0x8, scoped, tag = 'scoped memory for tpu_custom_call.1']
    #allocation4 [shape = 's32[2]{0}', space=sflag, size = 0x8, scoped, tag = 'scoped memory for tpu_custom_call.1']
    #allocation5 [shape = 'u8[1024]{0}', space=vmem, size = 0x400, scoped, tag = 'output window, operand 0']
    %6 = vsyncpa [#allocation3], 0
    %s7 = scalar_lea.sflag [#allocation3], 1
    %8 = vsyncpa %s7, 0
    %9 = vsyncpa [#allocation4], 0
    %s10 = scalar_lea.sflag [#allocation4], 1
    %11 = vsyncpa %s10, 0
    loop: start=0, step=1, limit=4
    $region2: #{tpu_custom_call.1} parent=1 // loop_pre_header
      _
    $region3: #{tpu_custom_call.1} parent=1 // loop_header
      %s13 = sphi 0, %s17
      %p14 = scmp.ge.s32.totalorder %s13, 4
      %s20 = sphi 0, %s32
      %s21 = sphi 0, %s28
      %s22 = sphi 0, %s20
      %s23 = sphi 0, %s21
      %s24 = sphi 0, %s22
      %s25 = sphi 0, %s23
      %s37 = sphi 0, %s39
      %s40 = sphi 0, %s37
      %s41 = sphi 0, %s40
      %s57 = sphi 0, %s41
      %s65 = sphi 0, %s67
      %s68 = sphi 0, %s65
      %s69 = sphi 0, %s68
      %s85 = sphi 0, %s69
    $region4: #{tpu_custom_call.1} parent=1 // loop_header_branch
      %16 = sbr.rel (%p14) target = $region8
    $region5: #{tpu_custom_call.1} parent=1 // loop_body
      %s18 = ssub.s32 %s13, 1
      %s19 = ssub.s32 %s13, 2
      %s26 = sadd.s32 1, %s21
      %p27 = scmp.ge.s32.totalorder %s26, 1
      %s28 = scalar_select %p27, 0, %s26
      %s29 = sadd.s32 1, %s20
      %s30 = scalar_select %p27, %s29, %s20
      %p31 = scmp.ge.s32.totalorder %s30, 2
      %s32 = scalar_select %p31, 0, %s30
      %s33 = ssub.s32 %s20, %s32
      %s34 = ssub.s32 %s21, %s28
      %s35 = sor.u32 %s33, %s34
      %p36 = scmp.eq.s32.totalorder %s35, 0
      %s38 = sadd.s32 %s37, 1
      %s39 = scalar_select %p36, %s37, %s38
      %p42 = pneg %p36
      %p43 = scmp.eq.s32.totalorder %s13, 1
      %p44 = por %p42, %p43
      %p45 = scmp.ne.s32.totalorder %s37, %s40
      %p46 = scmp.eq.s32.totalorder %s13, 0
      %p47 = por %p45, %p46
      %p48 = scmp.ne.s32.totalorder %s37, %s40
      %p49 = scmp.eq.s32.totalorder %s18, 1
      %p50 = por %p48, %p49
      %p51 = scmp.ne.s32.totalorder %s40, %s41
      %p52 = scmp.eq.s32.totalorder %s18, 0
      %p53 = por %p51, %p52
      %p54 = scmp.ne.s32.totalorder %s40, %s41
      %p55 = scmp.eq.s32.totalorder %s19, 1
      %p56 = por %p54, %p55
      %p58 = scmp.ne.s32.totalorder %s41, %s57
      %p59 = scmp.eq.s32.totalorder %s19, 0
      %p60 = por %p58, %p59
      %s61 = ssub.s32 %s20, %s32
      %s62 = ssub.s32 %s21, %s28
      %s63 = sor.u32 %s61, %s62
      %p64 = scmp.eq.s32.totalorder %s63, 0
      %s66 = sadd.s32 %s65, 1
      %s67 = scalar_select %p64, %s65, %s66
      %p70 = pneg %p64
      %p71 = scmp.eq.s32.totalorder %s13, 1
      %p72 = por %p70, %p71
      %p73 = scmp.ne.s32.totalorder %s65, %s68
      %p74 = scmp.eq.s32.totalorder %s13, 0
      %p75 = por %p73, %p74
      %p76 = scmp.ne.s32.totalorder %s65, %s68
      %p77 = scmp.eq.s32.totalorder %s18, 1
      %p78 = por %p76, %p77
      %p79 = scmp.ne.s32.totalorder %s68, %s69
      %p80 = scmp.eq.s32.totalorder %s18, 0
      %p81 = por %p79, %p80
      %p82 = scmp.ne.s32.totalorder %s68, %s69
      %p83 = scmp.eq.s32.totalorder %s19, 1
      %p84 = por %p82, %p83
      %p86 = scmp.ne.s32.totalorder %s69, %s85
      %p87 = scmp.eq.s32.totalorder %s19, 0
      %p88 = por %p86, %p87
      %p89 = scmp.le.s32.totalorder 1, %s13
      %p90 = scmp.lt.s32.totalorder %s13, 3
      %p91 = pnand %p89, %p90
      %p92 = pneg %p91
      // Predicated region
      $region9: #{tpu_custom_call.1} parent=5 // pred_check
        _
      $region10: #{tpu_custom_call.1} parent=5 // pred_check_branch
        %94 = sbr.rel (%p91) target = $region12
      $region11: #{tpu_custom_call.1} parent=5 // pred_region
        %s95 = ssub.s32 %s13, 1
      $region12: #{tpu_custom_call.1} parent=5 // pred_fallthru
        _
      %p96 = scmp.lt.s32.totalorder %s13, 2
      // Predicated region
      $region13: #{tpu_custom_call.1} parent=5 // pred_check
        %p97 = pneg %p96
      $region14: #{tpu_custom_call.1} parent=5 // pred_check_branch
        %99 = sbr.rel (%p97) target = $region16
      $region15: #{tpu_custom_call.1} parent=5 // pred_region
        // Predicated region
        $region17: #{tpu_custom_call.1} parent=15 // pred_check
          %p100 = pneg %p47
        $region18: #{tpu_custom_call.1} parent=15 // pred_check_branch
          %102 = sbr.rel (%p100) target = $region20
        $region19: #{tpu_custom_call.1} parent=15 // pred_region
          %s103 = sand.u32 %s37, 1
          %s104 = scalar_lea.sflag [#allocation3], %s103
          %s105 = sand.u32 %s37, 1
          %s106 = smul.addr %s105, 8
          %s107 = scalar_lea.vmem [#allocation2], %s106
          %s109 = ssub.s32 128, 128
          %110 = vsyncadd %s104, %s109
          %s111 = sadd.s32 %s21, %s20
          %s112 = smul.addr %s111, 128
          %s113 = scalar_lea.hbm %s0, %s112
          %s115 = sshll.u32 %s107, 4
          %s116 = int_to_ptr.vmem [resolvable:$true] %s115
          %118 = dma.hbm_to_vmem [thread:$0]  %s113, 128, %s116, %s104
        $region20: #{tpu_custom_call.1} parent=15 // pred_fallthru
          _
      $region16: #{tpu_custom_call.1} parent=5 // pred_fallthru
        _
      %p119 = scmp.le.s32.totalorder 1, %s13
      %p120 = scmp.lt.s32.totalorder %s13, 3
      %p121 = pnand %p119, %p120
      %p122 = pneg %p121
      // Predicated region
      $region21: #{tpu_custom_call.1} parent=5 // pred_check
        _
      $region22: #{tpu_custom_call.1} parent=5 // pred_check_branch
        %124 = sbr.rel (%p121) target = $region24
      $region23: #{tpu_custom_call.1} parent=5 // pred_region
        %s125 = ssub.s32 %s13, 1
        %s126 = sand.u32 %s40, 1
        %s127 = scalar_lea.sflag [#allocation3], %s126
        %s128 = sand.u32 %s40, 1
        %s129 = smul.addr %s128, 8
        %s130 = scalar_lea.vmem [#allocation2], %s129
        // Predicated region
        $region25: #{tpu_custom_call.1} parent=23 // pred_check
          %p131 = pneg %p53
        $region26: #{tpu_custom_call.1} parent=23 // pred_check_branch
          %133 = sbr.rel (%p131) target = $region28
        $region27: #{tpu_custom_call.1} parent=23 // pred_region
          %134 = dma.done %s127, 128
        $region28: #{tpu_custom_call.1} parent=23 // pred_fallthru
          _
        %s135 = sand.u32 %s40, 1
        %s136 = scalar_lea.sflag [#allocation3], %s135
        %s137 = sand.u32 %s40, 1
        %s138 = smul.addr %s137, 8
        %s139 = scalar_lea.vmem [#allocation2], %s138
        %p140 = pneg %p53
        %p141 = pneg %p50
        %p142 = pneg %p81
        %p143 = pneg %p78
        %s144 = sand.u32 %s68, 1
        %s145 = scalar_lea.sflag [#allocation4], %s144
        %s146 = sand.u32 %s68, 1
        %s147 = scalar_lea.vmem [#allocation5], %s146
        %v148 = vld [vmem:[%s130] sm:$0xff]
        %v149 = vrot.slane %v148, 4
        %v150 = vadd.f32 %v148, %v149
        %v151 = vrot.slane %v150, 2
        %v152 = vadd.f32 %v150, %v151
        %v153 = vrot.slane %v152, 1
        %v154 = vadd.f32 %v152, %v153
        %v155 = vmul.f32 %v148, %v148
        %v156 = vrot.slane %v155, 4
        %v157 = vadd.f32 %v155, %v156
        %v158 = vrot.slane %v157, 2
        %v159 = vadd.f32 %v157, %v158
        %v160 = vrot.slane %v159, 1
        %v161 = vadd.f32 %v159, %v160
        %v162 = vmul.f32 %v154, %v154
        %v163 = vmul.f32 %v162, 0.125
        %v164 = vsub.f32 %v161, %v163
        %v165 = vmul.f32 %v164, 0.14285715
        %v166 = vmax.f32 %v165, 0.0
        %v167 = vrsqrt.pop %v166
        %v168 = vmul.f32 %v166, %v167
        %vm169 = vcmp.eq.f32.partialorder %v166, inf
        %v170 = vsel %vm169, %v166, %v168
        %vm171 = vcmp.eq.f32.partialorder %v166, 0.0
        %v172 = vand.u32 %v166, 2147483648
        %v173 = vsel %vm171, %v172, %v170
        %v174 = vadd.f32 %v173, 0.0
        %175 = vst [vmem:[%s147] sm:$0x1] %v174
        %s176 = sand.u32 %s68, 1
        %s177 = scalar_lea.sflag [#allocation4], %s176
        %s178 = sand.u32 %s68, 1
        %s179 = scalar_lea.vmem [#allocation5], %s178
        // Predicated region
        $region29: #{tpu_custom_call.1} parent=23 // pred_check
          %p180 = pneg %p78
        $region30: #{tpu_custom_call.1} parent=23 // pred_check_branch
          %182 = sbr.rel (%p180) target = $region32
        $region31: #{tpu_custom_call.1} parent=23 // pred_region
          %s184 = ssub.s32 16, 16
          %185 = vsyncadd %s177, %s184
          %s186 = sadd.s32 %s23, %s22
          %s187 = smul.addr %s186, 16
          %s188 = scalar_lea.hbm %s1, %s187
          %s190 = sshll.u32 %s179, 4
          %s191 = int_to_ptr.vmem [resolvable:$true] %s190
          %193 = dma.vmem_to_hbm [thread:$0]  %s191, 16, %s188, %s177
        $region32: #{tpu_custom_call.1} parent=23 // pred_fallthru
          _
      $region24: #{tpu_custom_call.1} parent=5 // pred_fallthru
        _
      %p194 = scmp.le.s32.totalorder 2, %s13
      // Predicated region
      $region33: #{tpu_custom_call.1} parent=5 // pred_check
        %p195 = pneg %p194
      $region34: #{tpu_custom_call.1} parent=5 // pred_check_branch
        %197 = sbr.rel (%p195) target = $region36
      $region35: #{tpu_custom_call.1} parent=5 // pred_region
        %s198 = ssub.s32 %s13, 2
        // Predicated region
        $region37: #{tpu_custom_call.1} parent=35 // pred_check
          %p199 = pneg %p84
        $region38: #{tpu_custom_call.1} parent=35 // pred_check_branch
          %201 = sbr.rel (%p199) target = $region40
        $region39: #{tpu_custom_call.1} parent=35 // pred_region
          %s202 = sand.u32 %s69, 1
          %s203 = scalar_lea.sflag [#allocation4], %s202
          %s204 = sand.u32 %s69, 1
          %s205 = scalar_lea.vmem [#allocation5], %s204
          %206 = dma.done %s203, 16
        $region40: #{tpu_custom_call.1} parent=35 // pred_fallthru
          _
      $region36: #{tpu_custom_call.1} parent=5 // pred_fallthru
        _
    $region6: #{tpu_custom_call.1} parent=1 // loop_footer
      %s17 = sadd.s32 1, %s13
    $region7: #{tpu_custom_call.1} parent=1 // loop_footer_branch
      %12 = sbr.rel target = $region3
    $region8: #{tpu_custom_call.1} parent=1 // loop_exit
      _
    %207 = vsyncpa [#allocation3], 1
    %s208 = scalar_lea.sflag [#allocation3], 1
    %209 = vsyncpa %s208, 1
    %210 = vsyncpa [#allocation4], 1
    %s211 = scalar_lea.sflag [#allocation4], 1
    %212 = vsyncpa %s211, 1

</llo_original>
